<compile_context>
chip_gen: v5e
topology: v5e:2x2
jax: 0.10.0
libtpu: 0.0.40
codegen_flags: <defaults>
</compile_context>

<pallas_src>
from typing import NamedTuple, Optional

import jax
import jax.numpy as jnp
from jax.experimental import pallas as pl
from jax.experimental.pallas import tpu as pltpu


def _round_up(x, m):
    return (x + m - 1) // m * m


def _cdiv(a, b):
    return -(-a // b)


class ReconParams(NamedTuple):
    w1: jax.Array          # [H,  H2]   compute dtype (bf16 by default)
    b1: jax.Array          # [1,  H2]   f32
    w2: jax.Array          # [H2, F or F_pad] compute dtype
    b2: jax.Array          # [1,  F or F_pad] f32
    feature_size: int      # true (unpadded) F


# --------------------------------------------------------------------------
# Kernel
# --------------------------------------------------------------------------
def recon_dnn_kernel(x_ref, w1_ref, b1_ref, w2_ref, b2_ref, o_ref):
    # Cast x to the weight dtype so both matmuls run on the fast MXU path
    # (bf16 x bf16 -> f32 accumulate); no-op when weights are f32.
    x = x_ref[...].astype(w1_ref.dtype)
    # hidden = relu(x @ W1 + b1), accumulated in f32 on the MXU.
    h = jnp.dot(x, w1_ref[...], preferred_element_type=jnp.float32)
    h = jnp.maximum(h + b1_ref[...], 0.0)          # (tb, H2) + (1, H2)
    # out = hidden @ W2 + b2; cast the hidden back down to the weight dtype
    # so the second matmul also stays on the native MXU path.
    o = jnp.dot(h.astype(w2_ref.dtype), w2_ref[...],
                preferred_element_type=jnp.float32)
    o_ref[...] = (o + b2_ref[...]).astype(o_ref.dtype)


# --------------------------------------------------------------------------
# One-time parameter preparation (hoisted out of the per-call hot path)
# --------------------------------------------------------------------------
def prepare_params(w1, b1, w2, b2, *, compute_dtype=jnp.bfloat16):
    """Cast weights for the MXU and (for large F) lane-pad W2/b2 once.

    w1: [H, H2], b1: [1, H2], w2: [H2, F], b2: [1, F]  (weights are [in, out],
    i.e. transposed relative to torch's nn.Linear [out, in]).
    """
    F = w2.shape[1]
    if compute_dtype is not None:
        w1 = w1.astype(compute_dtype)
        w2 = w2.astype(compute_dtype)
    # Biases stay f32 — they are added to the f32 MXU accumulator.
    b1 = b1.astype(jnp.float32)
    b2 = b2.astype(jnp.float32)
    # Lane-dense output only pays off once F exceeds a vreg's 128 lanes; for
    # small F a masked store is cheaper than the extra output-slice copy.
    if F > 128 and F % 128 != 0:
        F_pad = _round_up(F, 128)
        w2 = jnp.pad(w2, ((0, 0), (0, F_pad - F)))
        b2 = jnp.pad(b2, ((0, 0), (0, F_pad - F)))
    return ReconParams(w1=w1, b1=b1, w2=w2, b2=b2, feature_size=F)


def _plan_batch(B, tb_cap, target_steps):
    """Tight batch tiling: smallest tb (multiple of 8) that covers B in
    n_steps tiles, with n_steps >= target_steps when B is large enough to
    split (keeps both v7x TensorCores busy via the 'parallel' grid axis)."""
    n_steps = _cdiv(B, tb_cap)
    if B >= target_steps * 8:
        n_steps = max(n_steps, target_steps)
    tb = _round_up(_cdiv(B, n_steps), 8)
    tb = min(tb, _round_up(tb_cap, 8))
    n_steps = _cdiv(B, tb)
    return tb, tb * n_steps, n_steps


# --------------------------------------------------------------------------
# Forward wrapper
# --------------------------------------------------------------------------
def recon_dnn(x, params: ReconParams, *, tb_cap=1024, target_steps=2):
    """ReconDNN forward: relu(x @ W1 + b1) @ W2 + b2.

    x: [B, H].  `params` comes from `prepare_params` (call it once and reuse
    it; it holds the cast/padded weights so the hot path stays minimal).
    """
    B, H = x.shape
    w1, b1, w2, b2, F = params
    H2 = w1.shape[1]
    F_out = w2.shape[1]            # possibly lane-padded
    out_dtype = x.dtype

    tb, B_pad, n_steps = _plan_batch(B, tb_cap, target_steps)
    if B_pad != B:
        x = jnp.pad(x, ((0, B_pad - B), (0, 0)))
    grid = (n_steps,)

    # Honest VMEM budget: whole weights single-buffered, x/out tiles
    # double-buffered by the pipeline, f32 hidden intermediate; + 4 MiB
    # margin, capped at 48 MiB so the config stays v7x-safe.
    weight_bytes = (w1.size * w1.dtype.itemsize + b1.size * b1.dtype.itemsize
                    + w2.size * w2.dtype.itemsize + b2.size * b2.dtype.itemsize)
    io_bytes = (2 * tb * H * x.dtype.itemsize
                + 2 * tb * F_out * jnp.dtype(out_dtype).itemsize)
    h_bytes = tb * H2 * 4
    vmem_limit = int(min(weight_bytes + io_bytes + h_bytes + (4 << 20), 48 << 20))

    # Weights / biases: whole-array resident in VMEM, single-buffered (their
    # block index would be constant across the grid anyway).
    vmem_whole = pl.BlockSpec(memory_space=pltpu.MemorySpace.VMEM)

    out = pl.pallas_call(
        recon_dnn_kernel,
        out_shape=jax.ShapeDtypeStruct((B_pad, F_out), out_dtype),
        grid=grid,
        in_specs=[
            pl.BlockSpec((tb, H), lambda i: (i, 0)),   # x tile (pipelined)
            vmem_whole,                                # W1
            vmem_whole,                                # b1
            vmem_whole,                                # W2
            vmem_whole,                                # b2
        ],
        out_specs=pl.BlockSpec((tb, F_out), lambda i: (i, 0)),
        compiler_params=pltpu.CompilerParams(
            dimension_semantics=("parallel",),
            vmem_limit_bytes=vmem_limit),
    )(x, w1, b1, w2, b2)

    # TODO(synk): if H2/F ever grow so the whole weights no longer fit VMEM,
    # add a K(=H2) reduction grid axis ("arbitrary") with an f32 accumulator.
    if B_pad != B or F_out != F:
        out = out[:B, :F]
    return out


# --------------------------------------------------------------------------
# Init mirroring nn.Linear's U(-1/sqrt(fan_in), 1/sqrt(fan_in))
# --------------------------------------------------------------------------
def init_params(key, hidden_size, feature_size, hidden_size2=512,
                dtype=jnp.float32):
    k1, k2, k3, k4 = jax.random.split(key, 4)
    s1 = 1.0 / jnp.sqrt(hidden_size)
    s2 = 1.0 / jnp.sqrt(hidden_size2)
    # stored as [in, out] (transposed relative to torch's [out, in])
    w1 = jax.random.uniform(k1, (hidden_size, hidden_size2), dtype, -s1, s1)
    b1 = jax.random.uniform(k2, (1, hidden_size2), dtype, -s1, s1)
    w2 = jax.random.uniform(k3, (hidden_size2, feature_size), dtype, -s2, s2)
    b2 = jax.random.uniform(k4, (1, feature_size), dtype, -s2, s2)
    return w1, b1, w2, b2


if __name__ == "__main__":
    hidden_size = 32     # input embedding dim
    feature_size = 64    # reconstructed feature dim
    hidden_size2 = 512   # default from the module
    batch = 16

    key = jax.random.PRNGKey(0)
    kx, kp = jax.random.split(key)
    x = jax.random.normal(kx, (batch, hidden_size), jnp.float32)
    w1, b1, w2, b2 = init_params(kp, hidden_size, feature_size, hidden_size2)

    def ref_fn(xx):
        return jnp.maximum(xx @ w1 + b1, 0.0) @ w2 + b2

    # ---- f32 path (tight tolerance) ----
    p_f32 = prepare_params(w1, b1, w2, b2, compute_dtype=None)
    out_f32 = jax.block_until_ready(recon_dnn(x, p_f32))
    assert out_f32.shape == (batch, feature_size)
    assert jnp.allclose(out_f32, ref_fn(x), atol=1e-4, rtol=1e-4), "f32 mismatch"

    # ---- default bf16 compute path (f32 accumulation, looser tolerance) ----
    p_bf16 = prepare_params(w1, b1, w2, b2)          # compute_dtype=bf16
    out_bf16 = jax.block_until_ready(recon_dnn(x, p_bf16))
    assert out_bf16.shape == (batch, feature_size)
    assert jnp.allclose(out_bf16, ref_fn(x), atol=3e-2, rtol=3e-2), "bf16 mismatch"

    # ---- odd batch size: exercises the batch-pad + slice path ----
    x_odd = jax.random.normal(kx, (10, hidden_size), jnp.float32)
    out_odd = jax.block_until_ready(recon_dnn(x_odd, p_f32))
    assert out_odd.shape == (10, feature_size)
    assert jnp.allclose(out_odd, ref_fn(x_odd), atol=1e-4, rtol=1e-4), "odd-batch mismatch"

    # ---- larger batch: exercises a multi-step (>=2 tile) parallel grid ----
    x_big = jax.random.normal(kx, (40, hidden_size), jnp.float32)
    out_big = jax.block_until_ready(recon_dnn(x_big, p_bf16))
    assert out_big.shape == (40, feature_size)
    assert jnp.allclose(out_big, ref_fn(x_big), atol=3e-2, rtol=3e-2), "big-batch mismatch"

    print("KERNEL_OK")
</pallas_src>

<mosaic_0001>
module attributes {stable_mosaic.version = 11 : i64} {
  func.func @recon_dnn_kernel(%arg0: i32, %arg1: memref<8x32xf32, #tpu.memory_space<vmem>>, %arg2: memref<32x512xf32, #tpu.memory_space<vmem>>, %arg3: memref<1x512xf32, #tpu.memory_space<vmem>>, %arg4: memref<512x64xf32, #tpu.memory_space<vmem>>, %arg5: memref<1x64xf32, #tpu.memory_space<vmem>>, %arg6: memref<8x64xf32, #tpu.memory_space<vmem>>) attributes {dimension_semantics = [#tpu.dimension_semantics<parallel>], iteration_bounds = array<i64: 2>, scalar_prefetch = 0 : i64, scratch_operands = 0 : i64, tpu.core_type = #tpu.core_type<tc>, window_params = [{transform_indices = @transform_0, window_bounds = array<i64: 8, 32>}, {pipeline_mode = #tpu.pipeline_mode<synchronous>, transform_indices = @transform_1, window_bounds = array<i64: 32, 512>}, {pipeline_mode = #tpu.pipeline_mode<synchronous>, transform_indices = @transform_2, window_bounds = array<i64: 1, 512>}, {pipeline_mode = #tpu.pipeline_mode<synchronous>, transform_indices = @transform_3, window_bounds = array<i64: 512, 64>}, {pipeline_mode = #tpu.pipeline_mode<synchronous>, transform_indices = @transform_4, window_bounds = array<i64: 1, 64>}, {transform_indices = @transform_5, window_bounds = array<i64: 8, 64>}]} {
    %c0 = arith.constant 0 : index
    %c0_0 = arith.constant 0 : index
    %0 = vector.load %arg1[%c0, %c0_0] : memref<8x32xf32, #tpu.memory_space<vmem>>, vector<8x32xf32>
    %c0_1 = arith.constant 0 : index
    %c0_2 = arith.constant 0 : index
    %1 = vector.load %arg2[%c0_1, %c0_2] : memref<32x512xf32, #tpu.memory_space<vmem>>, vector<32x512xf32>
    %cst = arith.constant dense<0.000000e+00> : vector<8x512xf32>
    %2 = tpu.matmul %0, %1, %cst {dimension_numbers = #tpu.dot_dimension_numbers<[1], [0], [0], [1], [0, 0, 1, 1], [], []>} : vector<8x32xf32>, vector<32x512xf32>, vector<8x512xf32> -> vector<8x512xf32>
    %c0_3 = arith.constant 0 : index
    %c0_4 = arith.constant 0 : index
    %3 = vector.load %arg3[%c0_3, %c0_4] : memref<1x512xf32, #tpu.memory_space<vmem>>, vector<1x512xf32>
    %4 = vector.broadcast %3 : vector<1x512xf32> to vector<8x512xf32>
    %5 = arith.addf %2, %4 : vector<8x512xf32>
    %cst_5 = arith.constant 0.000000e+00 : f32
    %6 = vector.broadcast %cst_5 : f32 to vector<8x512xf32>
    %7 = arith.maximumf %5, %6 : vector<8x512xf32>
    %c0_6 = arith.constant 0 : index
    %c0_7 = arith.constant 0 : index
    %8 = vector.load %arg4[%c0_6, %c0_7] : memref<512x64xf32, #tpu.memory_space<vmem>>, vector<512x64xf32>
    %cst_8 = arith.constant dense<0.000000e+00> : vector<8x64xf32>
    %9 = tpu.matmul %7, %8, %cst_8 {dimension_numbers = #tpu.dot_dimension_numbers<[1], [0], [0], [1], [0, 0, 1, 1], [], []>} : vector<8x512xf32>, vector<512x64xf32>, vector<8x64xf32> -> vector<8x64xf32>
    %c0_9 = arith.constant 0 : index
    %c0_10 = arith.constant 0 : index
    %10 = vector.load %arg5[%c0_9, %c0_10] : memref<1x64xf32, #tpu.memory_space<vmem>>, vector<1x64xf32>
    %11 = vector.broadcast %10 : vector<1x64xf32> to vector<8x64xf32>
    %12 = arith.addf %9, %11 : vector<8x64xf32>
    %c0_11 = arith.constant 0 : index
    %c0_12 = arith.constant 0 : index
    %13 = vector.load %arg6[%c0_11, %c0_12] : memref<8x64xf32, #tpu.memory_space<vmem>>, vector<8x64xf32>
    tpu.vector_store %arg6[%c0_11, %c0_12], %12 {strides = array<i32>} : memref<8x64xf32, #tpu.memory_space<vmem>>, vector<8x64xf32>,
    return
  }
  func.func @transform_0(%arg0: i32) -> (i32, i32) {
    %c0_i32 = arith.constant 0 : i32
    %c0_i32_0 = arith.constant 0 : i32
    return %arg0, %c0_i32 : i32, i32
  }
  func.func @transform_1(%arg0: i32) -> (i32, i32) {
    %c0_i32 = arith.constant 0 : i32
    %c0_i32_0 = arith.constant 0 : i32
    %c0_i32_1 = arith.constant 0 : i32
    return %c0_i32, %c0_i32_0 : i32, i32
  }
  func.func @transform_2(%arg0: i32) -> (i32, i32) {
    %c0_i32 = arith.constant 0 : i32
    %c0_i32_0 = arith.constant 0 : i32
    %c0_i32_1 = arith.constant 0 : i32
    return %c0_i32, %c0_i32_0 : i32, i32
  }
  func.func @transform_3(%arg0: i32) -> (i32, i32) {
    %c0_i32 = arith.constant 0 : i32
    %c0_i32_0 = arith.constant 0 : i32
    %c0_i32_1 = arith.constant 0 : i32
    return %c0_i32, %c0_i32_0 : i32, i32
  }
  func.func @transform_4(%arg0: i32) -> (i32, i32) {
    %c0_i32 = arith.constant 0 : i32
    %c0_i32_0 = arith.constant 0 : i32
    %c0_i32_1 = arith.constant 0 : i32
    return %c0_i32, %c0_i32_0 : i32, i32
  }
  func.func @transform_5(%arg0: i32) -> (i32, i32) {
    %c0_i32 = arith.constant 0 : i32
    %c0_i32_0 = arith.constant 0 : i32
    return %arg0, %c0_i32 : i32, i32
  }
}

</mosaic_0001>

<llo_original>
// kernel: tpu_custom_call.1
$region0: #{tpu_custom_call.1}
  #allocation0 [shape = 'u32[]', space=smem, size = 0x4, offset = 0x4, fixed_abs, tag = 'smem constant byte address 0x4 - core index']
  #allocation1 [shape = 'u32[72,128]{1,0:T(1,128)}', space=vmem, size = 0x9000, scoped, tag = 'internal scratch']
  %s0 = inlined_call_operand.vmem [shape: f32[16,32], index: 0, kind: input, shape index: {}]
  %s1 = inlined_call_operand.vmem [shape: f32[32,512], index: 1, kind: input, shape index: {}]
  %s2 = inlined_call_operand.vmem [shape: f32[1,512], index: 2, kind: input, shape index: {}]
  %s3 = inlined_call_operand.vmem [shape: f32[512,64], index: 3, kind: input, shape index: {}]
  %s4 = inlined_call_operand.vmem [shape: f32[1,64], index: 4, kind: input, shape index: {}]
  %s5 = inlined_call_operand.hbm [shape: f32[16,64], index: 5, kind: output, shape index: {}]
  %s6 = sld [smem:[#allocation0]]
  $region53: #{tpu_custom_call.1} parent=0
    _
  %s8 = ssub.s32 1, %s6
  %s9 = scalar_select 0, %s8, %s6
  $region1: #{tpu_custom_call.1} parent=0
    #allocation2 [shape = 'u8[8192]{0}', space=vmem, size = 0x2000, scoped, tag = 'output window, operand 0']
    #allocation3 [shape = 's32[2]{0}', space=sflag, size = 0x8, scoped, tag = 'scoped memory for tpu_custom_call.1']
    %10 = vsyncpa [#allocation3], 0
    %s11 = scalar_lea.sflag [#allocation3], 1
    %12 = vsyncpa %s11, 0
    loop: start=0, step=1, limit=4
    $region2: #{tpu_custom_call.1} parent=1 // loop_pre_header
      _
    $region3: #{tpu_custom_call.1} parent=1 // loop_header
      %s14 = sphi 0, %s18
      %p15 = scmp.ge.s32.totalorder %s14, 4
      %s24 = sphi 0, %s26
      %s27 = sphi 0, %s24
      %s28 = sphi 0, %s27
      %s44 = sphi 0, %s28
      %s48 = sphi 0, %s48
      %s50 = sphi 0, %s48
      %s51 = sphi 0, %s50
      %s65 = sphi 0, %s51
      %s69 = sphi 0, %s69
      %s71 = sphi 0, %s69
      %s72 = sphi 0, %s71
      %s86 = sphi 0, %s72
      %s90 = sphi 0, %s90
      %s92 = sphi 0, %s90
      %s93 = sphi 0, %s92
      %s107 = sphi 0, %s93
      %s111 = sphi 0, %s111
      %s113 = sphi 0, %s111
      %s114 = sphi 0, %s113
      %s128 = sphi 0, %s114
      %s134 = sphi 0, %s136
      %s137 = sphi 0, %s134
      %s138 = sphi 0, %s137
      %s154 = sphi 0, %s138
    $region4: #{tpu_custom_call.1} parent=1 // loop_header_branch
      %17 = sbr.rel (%p15) target = $region8
    $region5: #{tpu_custom_call.1} parent=1 // loop_body
      %s19 = ssub.s32 %s14, 1
      %s20 = ssub.s32 %s14, 2
      %s21 = sadd.s32 %s14, 1
      %s22 = ssub.s32 %s14, %s21
      %p23 = scmp.eq.s32.totalorder %s22, 0
      %s25 = sadd.s32 %s24, 1
      %s26 = scalar_select %p23, %s24, %s25
      %p29 = pneg %p23
      %p30 = scmp.eq.s32.totalorder %s14, 1
      %p31 = por %p29, %p30
      %p32 = scmp.ne.s32.totalorder %s24, %s27
      %p33 = scmp.eq.s32.totalorder %s14, 0
      %p34 = por %p32, %p33
      %p35 = scmp.ne.s32.totalorder %s24, %s27
      %p36 = scmp.eq.s32.totalorder %s19, 1
      %p37 = por %p35, %p36
      %p38 = scmp.ne.s32.totalorder %s27, %s28
      %p39 = scmp.eq.s32.totalorder %s19, 0
      %p40 = por %p38, %p39
      %p41 = scmp.ne.s32.totalorder %s27, %s28
      %p42 = scmp.eq.s32.totalorder %s20, 1
      %p43 = por %p41, %p42
      %p45 = scmp.ne.s32.totalorder %s28, %s44
      %p46 = scmp.eq.s32.totalorder %s20, 0
      %p47 = por %p45, %p46
      %s49 = sadd.s32 %s48, 1
      %p52 = scmp.eq.s32.totalorder %s14, 1
      %p53 = scmp.ne.s32.totalorder %s48, %s50
      %p54 = scmp.eq.s32.totalorder %s14, 0
      %p55 = por %p53, %p54
      %p56 = scmp.ne.s32.totalorder %s48, %s50
      %p57 = scmp.eq.s32.totalorder %s19, 1
      %p58 = por %p56, %p57
      %p59 = scmp.ne.s32.totalorder %s50, %s51
      %p60 = scmp.eq.s32.totalorder %s19, 0
      %p61 = por %p59, %p60
      %p62 = scmp.ne.s32.totalorder %s50, %s51
      %p63 = scmp.eq.s32.totalorder %s20, 1
      %p64 = por %p62, %p63
      %p66 = scmp.ne.s32.totalorder %s51, %s65
      %p67 = scmp.eq.s32.totalorder %s20, 0
      %p68 = por %p66, %p67
      %s70 = sadd.s32 %s69, 1
      %p73 = scmp.eq.s32.totalorder %s14, 1
      %p74 = scmp.ne.s32.totalorder %s69, %s71
      %p75 = scmp.eq.s32.totalorder %s14, 0
      %p76 = por %p74, %p75
      %p77 = scmp.ne.s32.totalorder %s69, %s71
      %p78 = scmp.eq.s32.totalorder %s19, 1
      %p79 = por %p77, %p78
      %p80 = scmp.ne.s32.totalorder %s71, %s72
      %p81 = scmp.eq.s32.totalorder %s19, 0
      %p82 = por %p80, %p81
      %p83 = scmp.ne.s32.totalorder %s71, %s72
      %p84 = scmp.eq.s32.totalorder %s20, 1
      %p85 = por %p83, %p84
      %p87 = scmp.ne.s32.totalorder %s72, %s86
      %p88 = scmp.eq.s32.totalorder %s20, 0
      %p89 = por %p87, %p88
      %s91 = sadd.s32 %s90, 1
      %p94 = scmp.eq.s32.totalorder %s14, 1
      %p95 = scmp.ne.s32.totalorder %s90, %s92
      %p96 = scmp.eq.s32.totalorder %s14, 0
      %p97 = por %p95, %p96
      %p98 = scmp.ne.s32.totalorder %s90, %s92
      %p99 = scmp.eq.s32.totalorder %s19, 1
      %p100 = por %p98, %p99
      %p101 = scmp.ne.s32.totalorder %s92, %s93
      %p102 = scmp.eq.s32.totalorder %s19, 0
      %p103 = por %p101, %p102
      %p104 = scmp.ne.s32.totalorder %s92, %s93
      %p105 = scmp.eq.s32.totalorder %s20, 1
      %p106 = por %p104, %p105
      %p108 = scmp.ne.s32.totalorder %s93, %s107
      %p109 = scmp.eq.s32.totalorder %s20, 0
      %p110 = por %p108, %p109
      %s112 = sadd.s32 %s111, 1
      %p115 = scmp.eq.s32.totalorder %s14, 1
      %p116 = scmp.ne.s32.totalorder %s111, %s113
      %p117 = scmp.eq.s32.totalorder %s14, 0
      %p118 = por %p116, %p117
      %p119 = scmp.ne.s32.totalorder %s111, %s113
      %p120 = scmp.eq.s32.totalorder %s19, 1
      %p121 = por %p119, %p120
      %p122 = scmp.ne.s32.totalorder %s113, %s114
      %p123 = scmp.eq.s32.totalorder %s19, 0
      %p124 = por %p122, %p123
      %p125 = scmp.ne.s32.totalorder %s113, %s114
      %p126 = scmp.eq.s32.totalorder %s20, 1
      %p127 = por %p125, %p126
      %p129 = scmp.ne.s32.totalorder %s114, %s128
      %p130 = scmp.eq.s32.totalorder %s20, 0
      %p131 = por %p129, %p130
      %s132 = ssub.s32 %s14, %s21
      %p133 = scmp.eq.s32.totalorder %s132, 0
      %s135 = sadd.s32 %s134, 1
      %s136 = scalar_select %p133, %s134, %s135
      %p139 = pneg %p133
      %p140 = scmp.eq.s32.totalorder %s14, 1
      %p141 = por %p139, %p140
      %p142 = scmp.ne.s32.totalorder %s134, %s137
      %p143 = scmp.eq.s32.totalorder %s14, 0
      %p144 = por %p142, %p143
      %p145 = scmp.ne.s32.totalorder %s134, %s137
      %p146 = scmp.eq.s32.totalorder %s19, 1
      %p147 = por %p145, %p146
      %p148 = scmp.ne.s32.totalorder %s137, %s138
      %p149 = scmp.eq.s32.totalorder %s19, 0
      %p150 = por %p148, %p149
      %p151 = scmp.ne.s32.totalorder %s137, %s138
      %p152 = scmp.eq.s32.totalorder %s20, 1
      %p153 = por %p151, %p152
      %p155 = scmp.ne.s32.totalorder %s138, %s154
      %p156 = scmp.eq.s32.totalorder %s20, 0
      %p157 = por %p155, %p156
      %p158 = scmp.le.s32.totalorder 1, %s14
      %p159 = scmp.lt.s32.totalorder %s14, 3
      %p160 = pnand %p158, %p159
      %p161 = pneg %p160
      // Predicated region
      $region9: #{tpu_custom_call.1} parent=5 // pred_check
        _
      $region10: #{tpu_custom_call.1} parent=5 // pred_check_branch
        %163 = sbr.rel (%p160) target = $region12
      $region11: #{tpu_custom_call.1} parent=5 // pred_region
        %s164 = ssub.s32 %s14, 1
        // Predicated region
        $region13: #{tpu_custom_call.1} parent=11 // pred_check
          %p165 = pneg %p61
        $region14: #{tpu_custom_call.1} parent=11 // pred_check_branch
          %167 = sbr.rel (%p165) target = $region16
        $region15: #{tpu_custom_call.1} parent=11 // pred_region
          _
        $region16: #{tpu_custom_call.1} parent=11 // pred_fallthru
          _
        // Predicated region
        $region17: #{tpu_custom_call.1} parent=11 // pred_check
          %p168 = pneg %p82
        $region18: #{tpu_custom_call.1} parent=11 // pred_check_branch
          %170 = sbr.rel (%p168) target = $region20
        $region19: #{tpu_custom_call.1} parent=11 // pred_region
          _
        $region20: #{tpu_custom_call.1} parent=11 // pred_fallthru
          _
        // Predicated region
        $region21: #{tpu_custom_call.1} parent=11 // pred_check
          %p171 = pneg %p103
        $region22: #{tpu_custom_call.1} parent=11 // pred_check_branch
          %173 = sbr.rel (%p171) target = $region24
        $region23: #{tpu_custom_call.1} parent=11 // pred_region
          _
        $region24: #{tpu_custom_call.1} parent=11 // pred_fallthru
          _
        // Predicated region
        $region25: #{tpu_custom_call.1} parent=11 // pred_check
          %p174 = pneg %p124
        $region26: #{tpu_custom_call.1} parent=11 // pred_check_branch
          %176 = sbr.rel (%p174) target = $region28
        $region27: #{tpu_custom_call.1} parent=11 // pred_region
          _
        $region28: #{tpu_custom_call.1} parent=11 // pred_fallthru
          _
      $region12: #{tpu_custom_call.1} parent=5 // pred_fallthru
        _
      %p177 = scmp.lt.s32.totalorder %s14, 2
      // Predicated region
      $region29: #{tpu_custom_call.1} parent=5 // pred_check
        %p178 = pneg %p177
      $region30: #{tpu_custom_call.1} parent=5 // pred_check_branch
        %180 = sbr.rel (%p178) target = $region32
      $region31: #{tpu_custom_call.1} parent=5 // pred_region
        // Predicated region
        $region33: #{tpu_custom_call.1} parent=31 // pred_check
          %p181 = pneg %p34
        $region34: #{tpu_custom_call.1} parent=31 // pred_check_branch
          %183 = sbr.rel (%p181) target = $region36
        $region35: #{tpu_custom_call.1} parent=31 // pred_region
          %p184 = scmp.lt.s32.totalorder %s14, 1
          %s185 = scalar_select %p184, %s14, 1
          %s186 = smul.addr %s185, 8
          %s187 = scalar_lea.vmem %s0, %s186
        $region36: #{tpu_custom_call.1} parent=31 // pred_fallthru
          _
      $region32: #{tpu_custom_call.1} parent=5 // pred_fallthru
        _
      %p188 = scmp.le.s32.totalorder 1, %s14
      %p189 = scmp.lt.s32.totalorder %s14, 3
      %p190 = pnand %p188, %p189
      %p191 = pneg %p190
      // Predicated region
      $region37: #{tpu_custom_call.1} parent=5 // pred_check
        _
      $region38: #{tpu_custom_call.1} parent=5 // pred_check_branch
        %193 = sbr.rel (%p190) target = $region40
      $region39: #{tpu_custom_call.1} parent=5 // pred_region
        %s194 = ssub.s32 %s14, 1
        %p195 = scmp.lt.s32.totalorder %s19, 1
        %s196 = scalar_select %p195, %s19, 1
        %s197 = smul.addr %s196, 8
        %s198 = scalar_lea.vmem %s0, %s197
        %p199 = pneg %p40
        %p200 = pneg %p37
        %p201 = pneg %p61
        %p202 = pneg %p58
        %p203 = pneg %p82
        %p204 = pneg %p79
        %p205 = pneg %p103
        %p206 = pneg %p100
        %p207 = pneg %p124
        %p208 = pneg %p121
        %p209 = pneg %p150
        %p210 = pneg %p147
        %s211 = sand.u32 %s137, 1
        %s212 = scalar_lea.sflag [#allocation3], %s211
        %s213 = sand.u32 %s137, 1
        %s214 = smul.addr %s213, 8
        %s215 = scalar_lea.vmem [#allocation2], %s214
        %p216 = scmp.lt.s32.totalorder %s19, 1
        %s217 = scalar_select %p216, %s19, 1
        %s218 = smul.addr %s217, 8
        %s219 = scalar_lea.vmem %s0, %s218
        %v220 = vld [vmem:[%s219] sm:$0xff]
        %v221 = vld [vmem:[%s1] sm:$0xff]
        %v222 = vld [vmem:[%s1 + $0x8] sm:$0xff]
        %v223 = vld [vmem:[%s1 + $0x10] sm:$0xff]
        %v224 = vld [vmem:[%s1 + $0x18] sm:$0xff]
        %v225 = vld [vmem:[%s1 + $0x20] sm:$0xff]
        %v226 = vld [vmem:[%s1 + $0x28] sm:$0xff]
        %v227 = vld [vmem:[%s1 + $0x30] sm:$0xff]
        %v228 = vld [vmem:[%s1 + $0x38] sm:$0xff]
        %v229 = vld [vmem:[%s1 + $0x40] sm:$0xff]
        %v230 = vld [vmem:[%s1 + $0x48] sm:$0xff]
        %v231 = vld [vmem:[%s1 + $0x50] sm:$0xff]
        %v232 = vld [vmem:[%s1 + $0x58] sm:$0xff]
        %v233 = vld [vmem:[%s1 + $0x60] sm:$0xff]
        %v234 = vld [vmem:[%s1 + $0x68] sm:$0xff]
        %v235 = vld [vmem:[%s1 + $0x70] sm:$0xff]
        %v236 = vld [vmem:[%s1 + $0x78] sm:$0xff]
        %v237 = vld [vmem:[%s2] sm:$0xf]
        %v239 = vperm.slane %v237, 0
        %v240 = vperm.slane %v237, 1
        %v241 = vperm.slane %v237, 2
        %v242 = vperm.slane %v237, 3
        %vm247 = vcmask 261120
        %v249 = vsel %vm247, %v220, 0
        %251 = vmatpush.msra.mxu0 0.0
        %252 = vmatpush.msra.mxu0 0.0
        %253 = vmatpush.msra.mxu0 0.0
        %254 = vmatpush.msra.mxu0 0.0
        %255 = vmatpush.msra.mxu0 0.0
        %256 = vmatpush.msra.mxu0 0.0
        %257 = vmatpush.msra.mxu0 0.0
        %258 = vmatpush.msra.mxu0 0.0
        %259 = vmatpush.msra.mxu0 0.0
        %260 = vmatpush.msra.mxu0 0.0
        %261 = vmatpush.msra.mxu0 0.0
        %262 = vmatpush.msra.mxu0 0.0
        %263 = vmatpush.msra.mxu0 %v233
        %264 = vmatpush.msra.mxu0 %v229
        %265 = vmatpush.msra.mxu0 %v225
        %266 = vmatpush.msra.mxu0 %v221
        %267 = vmatmul.f32.gmra.mxu0 %v249
        %v268 = vpop.f32.mrf.mxu0
        %v269 = vadd.f32 %v239, %v268
        %270 = vdwg.mxu0
        %271 = vmatpush.msra.mxu0 0.0
        %272 = vmatpush.msra.mxu0 0.0
        %273 = vmatpush.msra.mxu0 0.0
        %274 = vmatpush.msra.mxu0 0.0
        %275 = vmatpush.msra.mxu0 0.0
        %276 = vmatpush.msra.mxu0 0.0
        %277 = vmatpush.msra.mxu0 0.0
        %278 = vmatpush.msra.mxu0 0.0
        %279 = vmatpush.msra.mxu0 0.0
        %280 = vmatpush.msra.mxu0 0.0
        %281 = vmatpush.msra.mxu0 0.0
        %282 = vmatpush.msra.mxu0 0.0
        %283 = vmatpush.msra.mxu0 %v234
        %284 = vmatpush.msra.mxu0 %v230
        %285 = vmatpush.msra.mxu0 %v226
        %286 = vmatpush.msra.mxu0 %v222
        %287 = vmatmul.f32.gmra.mxu0 %v249
        %v288 = vpop.f32.mrf.mxu0
        %v289 = vadd.f32 %v240, %v288
        %290 = vdwg.mxu0
        %291 = vmatpush.msra.mxu0 0.0
        %292 = vmatpush.msra.mxu0 0.0
        %293 = vmatpush.msra.mxu0 0.0
        %294 = vmatpush.msra.mxu0 0.0
        %295 = vmatpush.msra.mxu0 0.0
        %296 = vmatpush.msra.mxu0 0.0
        %297 = vmatpush.msra.mxu0 0.0
        %298 = vmatpush.msra.mxu0 0.0
        %299 = vmatpush.msra.mxu0 0.0
        %300 = vmatpush.msra.mxu0 0.0
        %301 = vmatpush.msra.mxu0 0.0
        %302 = vmatpush.msra.mxu0 0.0
        %303 = vmatpush.msra.mxu0 %v235
        %304 = vmatpush.msra.mxu0 %v231
        %305 = vmatpush.msra.mxu0 %v227
        %306 = vmatpush.msra.mxu0 %v223
        %307 = vmatmul.f32.gmra.mxu0 %v249
        %v308 = vpop.f32.mrf.mxu0
        %v309 = vadd.f32 %v241, %v308
        %310 = vdwg.mxu0
        %311 = vmatpush.msra.mxu0 0.0
        %312 = vmatpush.msra.mxu0 0.0
        %313 = vmatpush.msra.mxu0 0.0
        %314 = vmatpush.msra.mxu0 0.0
        %315 = vmatpush.msra.mxu0 0.0
        %316 = vmatpush.msra.mxu0 0.0
        %317 = vmatpush.msra.mxu0 0.0
        %318 = vmatpush.msra.mxu0 0.0
        %319 = vmatpush.msra.mxu0 0.0
        %320 = vmatpush.msra.mxu0 0.0
        %321 = vmatpush.msra.mxu0 0.0
        %322 = vmatpush.msra.mxu0 0.0
        %323 = vmatpush.msra.mxu0 %v236
        %324 = vmatpush.msra.mxu0 %v232
        %325 = vmatpush.msra.mxu0 %v228
        %326 = vmatpush.msra.mxu0 %v224
        %327 = vmatmul.f32.gmra.mxu0 %v249
        %v328 = vpop.f32.mrf.mxu0
        %v329 = vadd.f32 %v242, %v328
        %330 = vdwg.mxu0
        %v331 = vmax.f32 %v269, 0.0
        %v332 = vmax.f32 %v289, 0.0
        %v333 = vmax.f32 %v309, 0.0
        %v334 = vmax.f32 %v329, 0.0
        %v335 = vld [vmem:[%s3] sm:$0xff]
        %v336 = vld [vmem:[%s3 + $0x8] sm:$0xff]
        %v337 = vld [vmem:[%s3 + $0x10] sm:$0xff]
        %v338 = vld [vmem:[%s3 + $0x18] sm:$0xff]
        %v339 = vld [vmem:[%s3 + $0x20] sm:$0xff]
        %v340 = vld [vmem:[%s3 + $0x28] sm:$0xff]
        %v341 = vld [vmem:[%s3 + $0x30] sm:$0xff]
        %v342 = vld [vmem:[%s3 + $0x38] sm:$0xff]
        %v343 = vld [vmem:[%s3 + $0x40] sm:$0xff]
        %v344 = vld [vmem:[%s3 + $0x48] sm:$0xff]
        %v345 = vld [vmem:[%s3 + $0x50] sm:$0xff]
        %v346 = vld [vmem:[%s3 + $0x58] sm:$0xff]
        %v347 = vld [vmem:[%s3 + $0x60] sm:$0xff]
        %v348 = vld [vmem:[%s3 + $0x68] sm:$0xff]
        %v349 = vld [vmem:[%s3 + $0x70] sm:$0xff]
        %v350 = vld [vmem:[%s3 + $0x78] sm:$0xff]
        %v351 = vld [vmem:[%s3 + $0x80] sm:$0xff]
        %v352 = vld [vmem:[%s3 + $0x88] sm:$0xff]
        %v353 = vld [vmem:[%s3 + $0x90] sm:$0xff]
        %v354 = vld [vmem:[%s3 + $0x98] sm:$0xff]
        %v355 = vld [vmem:[%s3 + $0xa0] sm:$0xff]
        %v356 = vld [vmem:[%s3 + $0xa8] sm:$0xff]
        %v357 = vld [vmem:[%s3 + $0xb0] sm:$0xff]
        %v358 = vld [vmem:[%s3 + $0xb8] sm:$0xff]
        %v359 = vld [vmem:[%s3 + $0xc0] sm:$0xff]
        %v360 = vld [vmem:[%s3 + $0xc8] sm:$0xff]
        %v361 = vld [vmem:[%s3 + $0xd0] sm:$0xff]
        %v362 = vld [vmem:[%s3 + $0xd8] sm:$0xff]
        %v363 = vld [vmem:[%s3 + $0xe0] sm:$0xff]
        %v364 = vld [vmem:[%s3 + $0xe8] sm:$0xff]
        %v365 = vld [vmem:[%s3 + $0xf0] sm:$0xff]
        %v366 = vld [vmem:[%s3 + $0xf8] sm:$0xff]
        %v367 = vld [vmem:[%s3 + $0x100] sm:$0xff]
        %v368 = vld [vmem:[%s3 + $0x108] sm:$0xff]
        %v369 = vld [vmem:[%s3 + $0x110] sm:$0xff]
        %v370 = vld [vmem:[%s3 + $0x118] sm:$0xff]
        %v371 = vld [vmem:[%s3 + $0x120] sm:$0xff]
        %v372 = vld [vmem:[%s3 + $0x128] sm:$0xff]
        %v373 = vld [vmem:[%s3 + $0x130] sm:$0xff]
        %v374 = vld [vmem:[%s3 + $0x138] sm:$0xff]
        %v375 = vld [vmem:[%s3 + $0x140] sm:$0xff]
        %v376 = vld [vmem:[%s3 + $0x148] sm:$0xff]
        %v377 = vld [vmem:[%s3 + $0x150] sm:$0xff]
        %v378 = vld [vmem:[%s3 + $0x158] sm:$0xff]
        %v379 = vld [vmem:[%s3 + $0x160] sm:$0xff]
        %v380 = vld [vmem:[%s3 + $0x168] sm:$0xff]
        %v381 = vld [vmem:[%s3 + $0x170] sm:$0xff]
        %v382 = vld [vmem:[%s3 + $0x178] sm:$0xff]
        %v383 = vld [vmem:[%s3 + $0x180] sm:$0xff]
        %v384 = vld [vmem:[%s3 + $0x188] sm:$0xff]
        %v385 = vld [vmem:[%s3 + $0x190] sm:$0xff]
        %v386 = vld [vmem:[%s3 + $0x198] sm:$0xff]
        %v387 = vld [vmem:[%s3 + $0x1a0] sm:$0xff]
        %v388 = vld [vmem:[%s3 + $0x1a8] sm:$0xff]
        %v389 = vld [vmem:[%s3 + $0x1b0] sm:$0xff]
        %v390 = vld [vmem:[%s3 + $0x1b8] sm:$0xff]
        %v391 = vld [vmem:[%s3 + $0x1c0] sm:$0xff]
        %v392 = vld [vmem:[%s3 + $0x1c8] sm:$0xff]
        %v393 = vld [vmem:[%s3 + $0x1d0] sm:$0xff]
        %v394 = vld [vmem:[%s3 + $0x1d8] sm:$0xff]
        %v395 = vld [vmem:[%s3 + $0x1e0] sm:$0xff]
        %v396 = vld [vmem:[%s3 + $0x1e8] sm:$0xff]
        %v397 = vld [vmem:[%s3 + $0x1f0] sm:$0xff]
        %v398 = vld [vmem:[%s3 + $0x1f8] sm:$0xff]
        %v399 = vld [vmem:[%s4] sm:$0x1]
        %v401 = vperm.slane %v399, 0
        %403 = vmatpush.msra.mxu0 %v350
        %404 = vmatpush.msra.mxu0 %v349
        %405 = vmatpush.msra.mxu0 %v348
        %406 = vmatpush.msra.mxu0 %v347
        %407 = vmatpush.msra.mxu0 %v346
        %408 = vmatpush.msra.mxu0 %v345
        %409 = vmatpush.msra.mxu0 %v344
        %410 = vmatpush.msra.mxu0 %v343
        %411 = vmatpush.msra.mxu0 %v342
        %412 = vmatpush.msra.mxu0 %v341
        %413 = vmatpush.msra.mxu0 %v340
        %414 = vmatpush.msra.mxu0 %v339
        %415 = vmatpush.msra.mxu0 %v338
        %416 = vmatpush.msra.mxu0 %v337
        %417 = vmatpush.msra.mxu0 %v336
        %418 = vmatpush.msra.mxu0 %v335
        %419 = vmatmul.f32.gmra.mxu0 %v331
        %v420 = vpop.f32.mrf.mxu0
        %v421 = vadd.f32 %v401, %v420
        %422 = vdwg.mxu0
        %423 = vmatpush.msra.mxu0 %v366
        %424 = vmatpush.msra.mxu0 %v365
        %425 = vmatpush.msra.mxu0 %v364
        %426 = vmatpush.msra.mxu0 %v363
        %427 = vmatpush.msra.mxu0 %v362
        %428 = vmatpush.msra.mxu0 %v361
        %429 = vmatpush.msra.mxu0 %v360
        %430 = vmatpush.msra.mxu0 %v359
        %431 = vmatpush.msra.mxu0 %v358
        %432 = vmatpush.msra.mxu0 %v357
        %433 = vmatpush.msra.mxu0 %v356
        %434 = vmatpush.msra.mxu0 %v355
        %435 = vmatpush.msra.mxu0 %v354
        %436 = vmatpush.msra.mxu0 %v353
        %437 = vmatpush.msra.mxu0 %v352
        %438 = vmatpush.msra.mxu0 %v351
        %439 = vmatmul.f32.gmra.mxu0 %v332
        %v440 = vpop.f32.mrf.mxu0
        %v441 = vadd.f32 %v421, %v440
        %442 = vdwg.mxu0
        %443 = vmatpush.msra.mxu0 %v382
        %444 = vmatpush.msra.mxu0 %v381
        %445 = vmatpush.msra.mxu0 %v380
        %446 = vmatpush.msra.mxu0 %v379
        %447 = vmatpush.msra.mxu0 %v378
        %448 = vmatpush.msra.mxu0 %v377
        %449 = vmatpush.msra.mxu0 %v376
        %450 = vmatpush.msra.mxu0 %v375
        %451 = vmatpush.msra.mxu0 %v374
        %452 = vmatpush.msra.mxu0 %v373
        %453 = vmatpush.msra.mxu0 %v372
        %454 = vmatpush.msra.mxu0 %v371
        %455 = vmatpush.msra.mxu0 %v370
        %456 = vmatpush.msra.mxu0 %v369
        %457 = vmatpush.msra.mxu0 %v368
        %458 = vmatpush.msra.mxu0 %v367
        %459 = vmatmul.f32.gmra.mxu0 %v333
        %v460 = vpop.f32.mrf.mxu0
        %v461 = vadd.f32 %v441, %v460
        %462 = vdwg.mxu0
        %463 = vmatpush.msra.mxu0 %v398
        %464 = vmatpush.msra.mxu0 %v397
        %465 = vmatpush.msra.mxu0 %v396
        %466 = vmatpush.msra.mxu0 %v395
        %467 = vmatpush.msra.mxu0 %v394
        %468 = vmatpush.msra.mxu0 %v393
        %469 = vmatpush.msra.mxu0 %v392
        %470 = vmatpush.msra.mxu0 %v391
        %471 = vmatpush.msra.mxu0 %v390
        %472 = vmatpush.msra.mxu0 %v389
        %473 = vmatpush.msra.mxu0 %v388
        %474 = vmatpush.msra.mxu0 %v387
        %475 = vmatpush.msra.mxu0 %v386
        %476 = vmatpush.msra.mxu0 %v385
        %477 = vmatpush.msra.mxu0 %v384
        %478 = vmatpush.msra.mxu0 %v383
        %479 = vmatmul.f32.gmra.mxu0 %v334
        %v480 = vpop.f32.mrf.mxu0
        %v481 = vadd.f32 %v461, %v480
        %482 = vdwg.mxu0
        %vm483 = vcmask 523264
        %484 = vst.msk [vmem:[%s215] sm:$0xff] %vm483, %v481
        %s485 = sand.u32 %s137, 1
        %s486 = scalar_lea.sflag [#allocation3], %s485
        %s487 = sand.u32 %s137, 1
        %s488 = smul.addr %s487, 8
        %s489 = scalar_lea.vmem [#allocation2], %s488
        // Predicated region
        $region41: #{tpu_custom_call.1} parent=39 // pred_check
          %p490 = pneg %p147
        $region42: #{tpu_custom_call.1} parent=39 // pred_check_branch
          %492 = sbr.rel (%p490) target = $region44
        $region43: #{tpu_custom_call.1} parent=39 // pred_region
          %494 = vsyncadd %s486, 0
          %s495 = smul.addr %s19, 8
          %s496 = scalar_lea.hbm %s5, %s495
          %s498 = sshll.u32 %s489, 4
          %s499 = int_to_ptr.vmem [resolvable:$true] %s498
          %s500 = sshll.u32 %s496, 4
          %s501 = int_to_ptr.hbm [resolvable:$true] %s500
          %503 = dma.vmem_to_hbm [thread:$0]  %s499, 128, %s501, %s486
        $region44: #{tpu_custom_call.1} parent=39 // pred_fallthru
          _
      $region40: #{tpu_custom_call.1} parent=5 // pred_fallthru
        _
      %p504 = scmp.le.s32.totalorder 2, %s14
      // Predicated region
      $region45: #{tpu_custom_call.1} parent=5 // pred_check
        %p505 = pneg %p504
      $region46: #{tpu_custom_call.1} parent=5 // pred_check_branch
        %507 = sbr.rel (%p505) target = $region48
      $region47: #{tpu_custom_call.1} parent=5 // pred_region
        %s508 = ssub.s32 %s14, 2
        // Predicated region
        $region49: #{tpu_custom_call.1} parent=47 // pred_check
          %p509 = pneg %p153
        $region50: #{tpu_custom_call.1} parent=47 // pred_check_branch
          %511 = sbr.rel (%p509) target = $region52
        $region51: #{tpu_custom_call.1} parent=47 // pred_region
          %s512 = sand.u32 %s138, 1
          %s513 = scalar_lea.sflag [#allocation3], %s512
          %s514 = sand.u32 %s138, 1
          %s515 = smul.addr %s514, 8
          %s516 = scalar_lea.vmem [#allocation2], %s515
          %518 = dma.done %s513, 128
        $region52: #{tpu_custom_call.1} parent=47 // pred_fallthru
          _
      $region48: #{tpu_custom_call.1} parent=5 // pred_fallthru
        _
    $region6: #{tpu_custom_call.1} parent=1 // loop_footer
      %s18 = sadd.s32 1, %s14
    $region7: #{tpu_custom_call.1} parent=1 // loop_footer_branch
      %13 = sbr.rel target = $region3
    $region8: #{tpu_custom_call.1} parent=1 // loop_exit
      _
    %519 = vsyncpa [#allocation3], 1
    %s520 = scalar_lea.sflag [#allocation3], 1
    %521 = vsyncpa %s520, 1

</llo_original>
